<compile_context>
chip_gen: v7x
topology: tpu7x:2x2x1
jax: 0.10.0
libtpu: 0.0.40
codegen_flags: <defaults>
</compile_context>

<pallas_src>
import jax
import jax.numpy as jnp
from jax.experimental import pallas as pl
from jax.experimental.pallas import tpu as pltpu


def bilstm_step_kernel(x_ref, wih_ref, whh_ref, b_ref, out_ref, h_ref, c_ref):
    """One LSTM timestep for one direction.

    x_ref   : (1, B, D)   current timestep input
    wih_ref : (1, D, 4H)  input->gates weights (resident across T)
    whh_ref : (1, H, 4H)  hidden->gates weights (resident across T)
    b_ref   : (1, 1, 4H)  combined bias (b_ih + b_hh)
    out_ref : (1, 1, B, H) output slot for this (direction, time)
    h_ref   : (B, H) f32  VMEM scratch, carried across the time grid axis
    c_ref   : (B, H) f32  VMEM scratch, carried across the time grid axis
    """
    t = pl.program_id(1)

    @pl.when(t == 0)
    def _():
        h_ref[...] = jnp.zeros_like(h_ref)
        c_ref[...] = jnp.zeros_like(c_ref)

    x_t = x_ref[0]           # (B, D)
    w_ih = wih_ref[0]        # (D, 4H)
    w_hh = whh_ref[0]        # (H, 4H)
    bias = b_ref[0]          # (1, 4H)

    H = h_ref.shape[-1]

    # Fused 4-gate projection on the MXU, f32 accumulation.
    gates = (
        jnp.dot(x_t, w_ih, preferred_element_type=jnp.float32)
        + jnp.dot(h_ref[...], w_hh, preferred_element_type=jnp.float32)
        + bias
    )                        # (B, 4H), PyTorch gate order: i, f, g, o

    i_g = jax.nn.sigmoid(gates[:, 0 * H:1 * H])
    f_g = jax.nn.sigmoid(gates[:, 1 * H:2 * H])
    g_g = jnp.tanh(gates[:, 2 * H:3 * H])
    o_g = jax.nn.sigmoid(gates[:, 3 * H:4 * H])

    c_new = f_g * c_ref[...] + i_g * g_g
    h_new = o_g * jnp.tanh(c_new)

    c_ref[...] = c_new
    h_ref[...] = h_new
    out_ref[0, 0] = h_new.astype(out_ref.dtype)


def bilstm_forward(x, w_ih_stack, w_hh_stack, b_stack):
    """x: (B, T, D) f32.
    w_ih_stack: (2, D, 4H)  [dir 0 = forward, dir 1 = backward], pre-transposed.
    w_hh_stack: (2, H, 4H)
    b_stack   : (2, 1, 4H)  b_ih + b_hh per direction.
    Returns (B, T, 2H) = concat([h_fwd, h_bwd], axis=-1), eval-mode dropout (identity).
    """
    B, T, D = x.shape
    H = w_hh_stack.shape[1]

    # (T, B, D): full last-two-dim blocks per timestep, one transpose at call.
    x_tbd = jnp.transpose(x, (1, 0, 2))

    # Time index for direction d at grid step t: t (fwd) or T-1-t (bwd).
    def time_idx(d, t):
        return t + d * (T - 1 - 2 * t)

    out = pl.pallas_call(
        bilstm_step_kernel,
        out_shape=jax.ShapeDtypeStruct((2, T, B, H), x.dtype),
        grid_spec=pltpu.PrefetchScalarGridSpec(
            num_scalar_prefetch=0,
            grid=(2, T),
            in_specs=[
                # x_t tile, streamed per step (reversed for the backward dir).
                pl.BlockSpec((1, B, D), lambda d, t: (time_idx(d, t), 0, 0)),
                # Weights / bias: index depends only on d -> fetched once per
                # direction, resident in VMEM across all T steps.
                pl.BlockSpec((1, D, 4 * H), lambda d, t: (d, 0, 0)),
                pl.BlockSpec((1, H, 4 * H), lambda d, t: (d, 0, 0)),
                pl.BlockSpec((1, 1, 4 * H), lambda d, t: (d, 0, 0)),
            ],
            out_specs=pl.BlockSpec(
                (1, 1, B, H), lambda d, t: (d, time_idx(d, t), 0, 0)
            ),
            scratch_shapes=[
                pltpu.VMEM((B, H), jnp.float32),  # h state
                pltpu.VMEM((B, H), jnp.float32),  # c state
            ],
        ),
        compiler_params=pltpu.CompilerParams(
            # Directions are independent -> parallel (2 TCs on v7x);
            # time carries h/c state -> arbitrary.
            dimension_semantics=("parallel", "arbitrary"),
        ),
    )(x_tbd, w_ih_stack, w_hh_stack, b_stack)

    # (2, T, B, H) -> (B, T, 2, H) -> (B, T, 2H)   [fwd ++ bwd, PyTorch order]
    return jnp.transpose(out, (2, 1, 0, 3)).reshape(B, T, 2 * H)


def _lstm_ref(x, w_ih, w_hh, b_ih, b_hh, reverse=False):
    """Pure-JAX reference, PyTorch nn.LSTM semantics (one direction)."""
    B, T, D = x.shape
    H = w_hh.shape[1]

    def step(carry, x_t):
        h, c = carry
        gates = x_t @ w_ih.T + b_ih + h @ w_hh.T + b_hh
        i = jax.nn.sigmoid(gates[:, 0 * H:1 * H])
        f = jax.nn.sigmoid(gates[:, 1 * H:2 * H])
        g = jnp.tanh(gates[:, 2 * H:3 * H])
        o = jax.nn.sigmoid(gates[:, 3 * H:4 * H])
        c = f * c + i * g
        h = o * jnp.tanh(c)
        return (h, c), h

    xs = jnp.transpose(x, (1, 0, 2))
    if reverse:
        xs = xs[::-1]
    (_, _), hs = jax.lax.scan(
        step, (jnp.zeros((B, H), x.dtype), jnp.zeros((B, H), x.dtype)), xs
    )
    if reverse:
        hs = hs[::-1]
    return jnp.transpose(hs, (1, 0, 2))  # (B, T, H)


if __name__ == "__main__":
    # Small deterministic shapes consistent with the module.
    B, T, D, H = 8, 8, 64, 32   # 4H = 128 -> lane-dense gate matmuls

    key = jax.random.PRNGKey(0)
    keys = jax.random.split(key, 9)
    x = jax.random.normal(keys[0], (B, T, D), dtype=jnp.float32)

    # PyTorch nn.LSTM init: uniform(-1/sqrt(H), 1/sqrt(H)), weights in
    # (4H, D)/(4H, H) layout, gate order i, f, g, o.
    bound = 1.0 / (H ** 0.5)

    def u(k, shape):
        return jax.random.uniform(k, shape, jnp.float32, -bound, bound)

    w_ih_f = u(keys[1], (4 * H, D))
    w_hh_f = u(keys[2], (4 * H, H))
    b_ih_f = u(keys[3], (4 * H,))
    b_hh_f = u(keys[4], (4 * H,))
    w_ih_b = u(keys[5], (4 * H, D))
    w_hh_b = u(keys[6], (4 * H, H))
    b_ih_b = u(keys[7], (4 * H,))
    b_hh_b = u(keys[8], (4 * H,))

    # Kernel-friendly packing, done ONCE at init (no per-call transpose).
    w_ih_stack = jnp.stack([w_ih_f.T, w_ih_b.T])                    # (2, D, 4H)
    w_hh_stack = jnp.stack([w_hh_f.T, w_hh_b.T])                    # (2, H, 4H)
    b_stack = jnp.stack([b_ih_f + b_hh_f, b_ih_b + b_hh_b]).reshape(2, 1, 4 * H)

    out = bilstm_forward(x, w_ih_stack, w_hh_stack, b_stack)
    jax.block_until_ready(out)

    # Cross-check against the pure-JAX bidirectional reference.
    ref_f = _lstm_ref(x, w_ih_f, w_hh_f, b_ih_f, b_hh_f, reverse=False)
    ref_b = _lstm_ref(x, w_ih_b, w_hh_b, b_ih_b, b_hh_b, reverse=True)
    ref = jnp.concatenate([ref_f, ref_b], axis=-1)

    assert out.shape == (B, T, 2 * H)
    assert jnp.allclose(out, ref, atol=1e-4, rtol=1e-4), "mismatch vs reference"
    print("KERNEL_OK")
</pallas_src>

<mosaic_0001>
module attributes {stable_mosaic.version = 11 : i64} {
  func.func @bilstm_step_kernel(%arg0: i32, %arg1: i32, %arg2: memref<1x8x64xf32, #tpu.memory_space<vmem>>, %arg3: memref<1x64x128xf32, #tpu.memory_space<vmem>>, %arg4: memref<1x32x128xf32, #tpu.memory_space<vmem>>, %arg5: memref<1x1x128xf32, #tpu.memory_space<vmem>>, %arg6: memref<1x1x8x32xf32, #tpu.memory_space<vmem>>, %arg7: memref<8x32xf32, #tpu.memory_space<vmem>>, %arg8: memref<8x32xf32, #tpu.memory_space<vmem>>) attributes {dimension_semantics = [#tpu.dimension_semantics<parallel>, #tpu.dimension_semantics<arbitrary>], iteration_bounds = array<i64: 2, 8>, scalar_prefetch = 0 : i64, scratch_operands = 2 : i64, tpu.core_type = #tpu.core_type<tc>, window_params = [{transform_indices = @transform_0, window_bounds = array<i64: 1, 8, 64>}, {transform_indices = @transform_1, window_bounds = array<i64: 1, 64, 128>}, {transform_indices = @transform_2, window_bounds = array<i64: 1, 32, 128>}, {transform_indices = @transform_3, window_bounds = array<i64: 1, 1, 128>}, {transform_indices = @transform_4, window_bounds = array<i64: 1, 1, 8, 32>}]} {
    %c0_i32 = arith.constant 0 : i32
    %0 = arith.cmpi eq, %arg1, %c0_i32 : i32
    %1 = arith.extui %0 : i1 to i32
    %c0_i32_0 = arith.constant 0 : i32
    %2 = arith.cmpi ne, %1, %c0_i32_0 : i32
    scf.if %2 {
      %cst_28 = arith.constant 0.000000e+00 : f32
      %48 = vector.broadcast %cst_28 : f32 to vector<8x32xf32>
      %c0_29 = arith.constant 0 : index
      %c0_30 = arith.constant 0 : index
      %49 = vector.load %arg7[%c0_29, %c0_30] : memref<8x32xf32, #tpu.memory_space<vmem>>, vector<8x32xf32>
      tpu.vector_store %arg7[%c0_29, %c0_30], %48 {strides = array<i32>} : memref<8x32xf32, #tpu.memory_space<vmem>>, vector<8x32xf32>,
      %cst_31 = arith.constant 0.000000e+00 : f32
      %50 = vector.broadcast %cst_31 : f32 to vector<8x32xf32>
      %c0_32 = arith.constant 0 : index
      %c0_33 = arith.constant 0 : index
      %51 = vector.load %arg8[%c0_32, %c0_33] : memref<8x32xf32, #tpu.memory_space<vmem>>, vector<8x32xf32>
      tpu.vector_store %arg8[%c0_32, %c0_33], %50 {strides = array<i32>} : memref<8x32xf32, #tpu.memory_space<vmem>>, vector<8x32xf32>,
    } else {
    }
    %c0 = arith.constant 0 : index
    %c0_1 = arith.constant 0 : index
    %c0_2 = arith.constant 0 : index
    %3 = vector.load %arg2[%c0, %c0_1, %c0_2] : memref<1x8x64xf32, #tpu.memory_space<vmem>>, vector<1x8x64xf32>
    %4 = vector.shape_cast %3 : vector<1x8x64xf32> to vector<8x64xf32>
    %c0_3 = arith.constant 0 : index
    %c0_4 = arith.constant 0 : index
    %c0_5 = arith.constant 0 : index
    %5 = vector.load %arg3[%c0_3, %c0_4, %c0_5] : memref<1x64x128xf32, #tpu.memory_space<vmem>>, vector<1x64x128xf32>
    %6 = vector.shape_cast %5 : vector<1x64x128xf32> to vector<64x128xf32>
    %c0_6 = arith.constant 0 : index
    %c0_7 = arith.constant 0 : index
    %c0_8 = arith.constant 0 : index
    %7 = vector.load %arg4[%c0_6, %c0_7, %c0_8] : memref<1x32x128xf32, #tpu.memory_space<vmem>>, vector<1x32x128xf32>
    %8 = vector.shape_cast %7 : vector<1x32x128xf32> to vector<32x128xf32>
    %c0_9 = arith.constant 0 : index
    %c0_10 = arith.constant 0 : index
    %c0_11 = arith.constant 0 : index
    %9 = vector.load %arg5[%c0_9, %c0_10, %c0_11] : memref<1x1x128xf32, #tpu.memory_space<vmem>>, vector<1x1x128xf32>
    %10 = vector.shape_cast %9 : vector<1x1x128xf32> to vector<1x128xf32>
    %cst = arith.constant dense<0.000000e+00> : vector<8x128xf32>
    %11 = tpu.matmul %4, %6, %cst {dimension_numbers = #tpu.dot_dimension_numbers<[1], [0], [0], [1], [0, 0, 1, 1], [], []>} : vector<8x64xf32>, vector<64x128xf32>, vector<8x128xf32> -> vector<8x128xf32>
    %c0_12 = arith.constant 0 : index
    %c0_13 = arith.constant 0 : index
    %12 = vector.load %arg7[%c0_12, %c0_13] : memref<8x32xf32, #tpu.memory_space<vmem>>, vector<8x32xf32>
    %cst_14 = arith.constant dense<0.000000e+00> : vector<8x128xf32>
    %13 = tpu.matmul %12, %8, %cst_14 {dimension_numbers = #tpu.dot_dimension_numbers<[1], [0], [0], [1], [0, 0, 1, 1], [], []>} : vector<8x32xf32>, vector<32x128xf32>, vector<8x128xf32> -> vector<8x128xf32>
    %14 = arith.addf %11, %13 : vector<8x128xf32>
    %15 = vector.broadcast %10 : vector<1x128xf32> to vector<8x128xf32>
    %16 = arith.addf %14, %15 : vector<8x128xf32>
    %17 = vector.extract_strided_slice %16 {offsets = [0, 0], sizes = [8, 32], strides = [1, 1]} : vector<8x128xf32> to vector<8x32xf32>
    %18 = arith.negf %17 : vector<8x32xf32>
    %19 = math.exp %18 : vector<8x32xf32>
    %cst_15 = arith.constant 1.000000e+00 : f32
    %20 = vector.broadcast %cst_15 : f32 to vector<8x32xf32>
    %21 = arith.addf %20, %19 : vector<8x32xf32>
    %22 = arith.divf %20, %21 : vector<8x32xf32>
    %23 = vector.extract_strided_slice %16 {offsets = [0, 32], sizes = [8, 32], strides = [1, 1]} : vector<8x128xf32> to vector<8x32xf32>
    %24 = arith.negf %23 : vector<8x32xf32>
    %25 = math.exp %24 : vector<8x32xf32>
    %cst_16 = arith.constant 1.000000e+00 : f32
    %26 = vector.broadcast %cst_16 : f32 to vector<8x32xf32>
    %27 = arith.addf %26, %25 : vector<8x32xf32>
    %28 = arith.divf %26, %27 : vector<8x32xf32>
    %29 = vector.extract_strided_slice %16 {offsets = [0, 64], sizes = [8, 32], strides = [1, 1]} : vector<8x128xf32> to vector<8x32xf32>
    %30 = math.tanh %29 : vector<8x32xf32>
    %31 = vector.extract_strided_slice %16 {offsets = [0, 96], sizes = [8, 32], strides = [1, 1]} : vector<8x128xf32> to vector<8x32xf32>
    %32 = arith.negf %31 : vector<8x32xf32>
    %33 = math.exp %32 : vector<8x32xf32>
    %cst_17 = arith.constant 1.000000e+00 : f32
    %34 = vector.broadcast %cst_17 : f32 to vector<8x32xf32>
    %35 = arith.addf %34, %33 : vector<8x32xf32>
    %36 = arith.divf %34, %35 : vector<8x32xf32>
    %c0_18 = arith.constant 0 : index
    %c0_19 = arith.constant 0 : index
    %37 = vector.load %arg8[%c0_18, %c0_19] : memref<8x32xf32, #tpu.memory_space<vmem>>, vector<8x32xf32>
    %38 = arith.mulf %28, %37 : vector<8x32xf32>
    %39 = arith.mulf %22, %30 : vector<8x32xf32>
    %40 = arith.addf %38, %39 : vector<8x32xf32>
    %41 = math.tanh %40 : vector<8x32xf32>
    %42 = arith.mulf %36, %41 : vector<8x32xf32>
    %c0_20 = arith.constant 0 : index
    %c0_21 = arith.constant 0 : index
    %43 = vector.load %arg8[%c0_20, %c0_21] : memref<8x32xf32, #tpu.memory_space<vmem>>, vector<8x32xf32>
    tpu.vector_store %arg8[%c0_20, %c0_21], %40 {strides = array<i32>} : memref<8x32xf32, #tpu.memory_space<vmem>>, vector<8x32xf32>,
    %c0_22 = arith.constant 0 : index
    %c0_23 = arith.constant 0 : index
    %44 = vector.load %arg7[%c0_22, %c0_23] : memref<8x32xf32, #tpu.memory_space<vmem>>, vector<8x32xf32>
    tpu.vector_store %arg7[%c0_22, %c0_23], %42 {strides = array<i32>} : memref<8x32xf32, #tpu.memory_space<vmem>>, vector<8x32xf32>,
    %c0_24 = arith.constant 0 : index
    %c0_25 = arith.constant 0 : index
    %c0_26 = arith.constant 0 : index
    %c0_27 = arith.constant 0 : index
    %45 = vector.load %arg6[%c0_24, %c0_25, %c0_26, %c0_27] : memref<1x1x8x32xf32, #tpu.memory_space<vmem>>, vector<1x1x8x32xf32>
    %46 = vector.shape_cast %45 : vector<1x1x8x32xf32> to vector<8x32xf32>
    %47 = vector.shape_cast %42 : vector<8x32xf32> to vector<1x1x8x32xf32>
    tpu.vector_store %arg6[%c0_24, %c0_25, %c0_26, %c0_27], %47 {strides = array<i32>} : memref<1x1x8x32xf32, #tpu.memory_space<vmem>>, vector<1x1x8x32xf32>,
    return
  }
  func.func @transform_0(%arg0: i32, %arg1: i32) -> (i32, i32, i32) {
    %c2_i32 = arith.constant 2 : i32
    %0 = arith.muli %c2_i32, %arg1 : i32
    %c7_i32 = arith.constant 7 : i32
    %1 = arith.subi %c7_i32, %0 : i32
    %2 = arith.muli %arg0, %1 : i32
    %3 = arith.addi %arg1, %2 : i32
    %c0_i32 = arith.constant 0 : i32
    %c0_i32_0 = arith.constant 0 : i32
    %c0_i32_1 = arith.constant 0 : i32
    return %3, %c0_i32, %c0_i32_0 : i32, i32, i32
  }
  func.func @transform_1(%arg0: i32, %arg1: i32) -> (i32, i32, i32) {
    %c0_i32 = arith.constant 0 : i32
    %c0_i32_0 = arith.constant 0 : i32
    %c0_i32_1 = arith.constant 0 : i32
    return %arg0, %c0_i32, %c0_i32_0 : i32, i32, i32
  }
  func.func @transform_2(%arg0: i32, %arg1: i32) -> (i32, i32, i32) {
    %c0_i32 = arith.constant 0 : i32
    %c0_i32_0 = arith.constant 0 : i32
    %c0_i32_1 = arith.constant 0 : i32
    return %arg0, %c0_i32, %c0_i32_0 : i32, i32, i32
  }
  func.func @transform_3(%arg0: i32, %arg1: i32) -> (i32, i32, i32) {
    %c0_i32 = arith.constant 0 : i32
    %c0_i32_0 = arith.constant 0 : i32
    %c0_i32_1 = arith.constant 0 : i32
    return %arg0, %c0_i32, %c0_i32_0 : i32, i32, i32
  }
  func.func @transform_4(%arg0: i32, %arg1: i32) -> (i32, i32, i32, i32) {
    %c2_i32 = arith.constant 2 : i32
    %0 = arith.muli %c2_i32, %arg1 : i32
    %c7_i32 = arith.constant 7 : i32
    %1 = arith.subi %c7_i32, %0 : i32
    %2 = arith.muli %arg0, %1 : i32
    %3 = arith.addi %arg1, %2 : i32
    %c0_i32 = arith.constant 0 : i32
    %c0_i32_0 = arith.constant 0 : i32
    %c0_i32_1 = arith.constant 0 : i32
    return %arg0, %3, %c0_i32, %c0_i32_0 : i32, i32, i32, i32
  }
}

</mosaic_0001>

<llo_original>
// kernel: tpu_custom_call.1
$region0: #{tpu_custom_call.1}
  #allocation0 [shape = 'u32[]', space=smem, size = 0x4, offset = 0x4, fixed_abs, tag = 'smem constant byte address 0x4 - core index']
  #allocation1 [shape = 'u32[144,128]{1,0:T(1,128)}', space=vmem, size = 0x12000, scoped, tag = 'internal scratch']
  #allocation2 [shape = 'f32[8,32]{1,0:T(8,128)}', space=vmem, size = 0x1000, scoped, tag = 'scratch operand']
  #allocation3 [shape = 'f32[8,32]{1,0:T(8,128)}', space=vmem, size = 0x1000, scoped, tag = 'scratch operand']
  %s0 = inlined_call_operand.hbm [shape: f32[8,8,64], index: 0, kind: input, shape index: {}]
  %s1 = inlined_call_operand.hbm [shape: f32[2,64,128], index: 1, kind: input, shape index: {}]
  %s2 = inlined_call_operand.hbm [shape: f32[2,32,128], index: 2, kind: input, shape index: {}]
  %s3 = inlined_call_operand.vmem [shape: f32[2,1,128], index: 3, kind: input, shape index: {}]
  %s4 = inlined_call_operand.hbm [shape: f32[2,8,8,32], index: 4, kind: output, shape index: {}]
  %s5 = sld [smem:[#allocation0]]
  $region65: #{tpu_custom_call.1} parent=0
    _
  %s7 = ssub.s32 1, %s5
  %s8 = scalar_select 0, %s7, %s5
  $region1: #{tpu_custom_call.1} parent=0
    #allocation4 [shape = 'u8[8192]{0}', space=vmem, size = 0x2000, scoped, tag = 'input window, operand 0']
    #allocation5 [shape = 's32[2]{0}', space=sflag, size = 0x8, scoped, tag = 'scoped memory for tpu_custom_call.1']
    #allocation6 [shape = 's32[2]{0}', space=sflag, size = 0x8, scoped, tag = 'scoped memory for tpu_custom_call.1']
    #allocation7 [shape = 'u8[65536]{0}', space=vmem, size = 0x10000, scoped, tag = 'input window, operand 1']
    #allocation8 [shape = 's32[2]{0}', space=sflag, size = 0x8, scoped, tag = 'scoped memory for tpu_custom_call.1']
    #allocation9 [shape = 'u8[32768]{0}', space=vmem, size = 0x8000, scoped, tag = 'input window, operand 2']
    #allocation10 [shape = 'u8[8192]{0}', space=vmem, size = 0x2000, scoped, tag = 'output window, operand 0']
    %9 = vsyncpa [#allocation5], 0
    %s10 = scalar_lea.sflag [#allocation5], 1
    %11 = vsyncpa %s10, 0
    %12 = vsyncpa [#allocation8], 0
    %s13 = scalar_lea.sflag [#allocation8], 1
    %14 = vsyncpa %s13, 0
    %15 = vsyncpa [#allocation6], 0
    %s16 = scalar_lea.sflag [#allocation6], 1
    %17 = vsyncpa %s16, 0
    loop: start=0, step=1, limit=18
    $region2: #{tpu_custom_call.1} parent=1 // loop_pre_header
      _
    $region3: #{tpu_custom_call.1} parent=1 // loop_header
      %s19 = sphi 0, %s23
      %p20 = scmp.ge.s32.totalorder %s19, 18
      %s26 = sphi 0, %s38
      %s27 = sphi 0, %s34
      %s28 = sphi 0, %s26
      %s29 = sphi 0, %s27
      %s30 = sphi 0, %s28
      %s31 = sphi 0, %s29
      %s49 = sphi 0, %s51
      %s52 = sphi 0, %s49
      %s53 = sphi 0, %s52
      %s69 = sphi 0, %s53
      %s75 = sphi 0, %s77
      %s78 = sphi 0, %s75
      %s79 = sphi 0, %s78
      %s95 = sphi 0, %s79
      %s101 = sphi 0, %s103
      %s104 = sphi 0, %s101
      %s105 = sphi 0, %s104
      %s121 = sphi 0, %s105
      %s127 = sphi 0, %s129
      %s130 = sphi 0, %s127
      %s131 = sphi 0, %s130
      %s147 = sphi 0, %s131
      %s163 = sphi 0, %s165
      %s166 = sphi 0, %s163
      %s167 = sphi 0, %s166
      %s183 = sphi 0, %s167
    $region4: #{tpu_custom_call.1} parent=1 // loop_header_branch
      %22 = sbr.rel (%p20) target = $region8
    $region5: #{tpu_custom_call.1} parent=1 // loop_body
      %s24 = ssub.s32 %s19, 1
      %s25 = ssub.s32 %s19, 2
      %s32 = sadd.s32 1, %s27
      %p33 = scmp.ge.s32.totalorder %s32, 8
      %s34 = scalar_select %p33, 0, %s32
      %s35 = sadd.s32 1, %s26
      %s36 = scalar_select %p33, %s35, %s26
      %p37 = scmp.ge.s32.totalorder %s36, 2
      %s38 = scalar_select %p37, 0, %s36
      %s39 = smul.u32 %s27, 2
      %s40 = ssub.s32 7, %s39
      %s41 = smul.u32 %s26, %s40
      %s42 = sadd.s32 %s27, %s41
      %s43 = smul.u32 %s34, 2
      %s44 = ssub.s32 7, %s43
      %s45 = smul.u32 %s38, %s44
      %s46 = sadd.s32 %s34, %s45
      %s47 = ssub.s32 %s42, %s46
      %p48 = scmp.eq.s32.totalorder %s47, 0
      %s50 = sadd.s32 %s49, 1
      %s51 = scalar_select %p48, %s49, %s50
      %p54 = pneg %p48
      %p55 = scmp.eq.s32.totalorder %s19, 15
      %p56 = por %p54, %p55
      %p57 = scmp.ne.s32.totalorder %s49, %s52
      %p58 = scmp.eq.s32.totalorder %s19, 0
      %p59 = por %p57, %p58
      %p60 = scmp.ne.s32.totalorder %s49, %s52
      %p61 = scmp.eq.s32.totalorder %s24, 15
      %p62 = por %p60, %p61
      %p63 = scmp.ne.s32.totalorder %s52, %s53
      %p64 = scmp.eq.s32.totalorder %s24, 0
      %p65 = por %p63, %p64
      %p66 = scmp.ne.s32.totalorder %s52, %s53
      %p67 = scmp.eq.s32.totalorder %s25, 15
      %p68 = por %p66, %p67
      %p70 = scmp.ne.s32.totalorder %s53, %s69
      %p71 = scmp.eq.s32.totalorder %s25, 0
      %p72 = por %p70, %p71
      %s73 = ssub.s32 %s26, %s38
      %p74 = scmp.eq.s32.totalorder %s73, 0
      %s76 = sadd.s32 %s75, 1
      %s77 = scalar_select %p74, %s75, %s76
      %p80 = pneg %p74
      %p81 = scmp.eq.s32.totalorder %s19, 15
      %p82 = por %p80, %p81
      %p83 = scmp.ne.s32.totalorder %s75, %s78
      %p84 = scmp.eq.s32.totalorder %s19, 0
      %p85 = por %p83, %p84
      %p86 = scmp.ne.s32.totalorder %s75, %s78
      %p87 = scmp.eq.s32.totalorder %s24, 15
      %p88 = por %p86, %p87
      %p89 = scmp.ne.s32.totalorder %s78, %s79
      %p90 = scmp.eq.s32.totalorder %s24, 0
      %p91 = por %p89, %p90
      %p92 = scmp.ne.s32.totalorder %s78, %s79
      %p93 = scmp.eq.s32.totalorder %s25, 15
      %p94 = por %p92, %p93
      %p96 = scmp.ne.s32.totalorder %s79, %s95
      %p97 = scmp.eq.s32.totalorder %s25, 0
      %p98 = por %p96, %p97
      %s99 = ssub.s32 %s26, %s38
      %p100 = scmp.eq.s32.totalorder %s99, 0
      %s102 = sadd.s32 %s101, 1
      %s103 = scalar_select %p100, %s101, %s102
      %p106 = pneg %p100
      %p107 = scmp.eq.s32.totalorder %s19, 15
      %p108 = por %p106, %p107
      %p109 = scmp.ne.s32.totalorder %s101, %s104
      %p110 = scmp.eq.s32.totalorder %s19, 0
      %p111 = por %p109, %p110
      %p112 = scmp.ne.s32.totalorder %s101, %s104
      %p113 = scmp.eq.s32.totalorder %s24, 15
      %p114 = por %p112, %p113
      %p115 = scmp.ne.s32.totalorder %s104, %s105
      %p116 = scmp.eq.s32.totalorder %s24, 0
      %p117 = por %p115, %p116
      %p118 = scmp.ne.s32.totalorder %s104, %s105
      %p119 = scmp.eq.s32.totalorder %s25, 15
      %p120 = por %p118, %p119
      %p122 = scmp.ne.s32.totalorder %s105, %s121
      %p123 = scmp.eq.s32.totalorder %s25, 0
      %p124 = por %p122, %p123
      %s125 = ssub.s32 %s26, %s38
      %p126 = scmp.eq.s32.totalorder %s125, 0
      %s128 = sadd.s32 %s127, 1
      %s129 = scalar_select %p126, %s127, %s128
      %p132 = pneg %p126
      %p133 = scmp.eq.s32.totalorder %s19, 15
      %p134 = por %p132, %p133
      %p135 = scmp.ne.s32.totalorder %s127, %s130
      %p136 = scmp.eq.s32.totalorder %s19, 0
      %p137 = por %p135, %p136
      %p138 = scmp.ne.s32.totalorder %s127, %s130
      %p139 = scmp.eq.s32.totalorder %s24, 15
      %p140 = por %p138, %p139
      %p141 = scmp.ne.s32.totalorder %s130, %s131
      %p142 = scmp.eq.s32.totalorder %s24, 0
      %p143 = por %p141, %p142
      %p144 = scmp.ne.s32.totalorder %s130, %s131
      %p145 = scmp.eq.s32.totalorder %s25, 15
      %p146 = por %p144, %p145
      %p148 = scmp.ne.s32.totalorder %s131, %s147
      %p149 = scmp.eq.s32.totalorder %s25, 0
      %p150 = por %p148, %p149
      %s151 = smul.u32 %s27, 2
      %s152 = ssub.s32 7, %s151
      %s153 = smul.u32 %s26, %s152
      %s154 = sadd.s32 %s27, %s153
      %s155 = smul.u32 %s34, 2
      %s156 = ssub.s32 7, %s155
      %s157 = smul.u32 %s38, %s156
      %s158 = sadd.s32 %s34, %s157
      %s159 = ssub.s32 %s26, %s38
      %s160 = ssub.s32 %s154, %s158
      %s161 = sor.u32 %s159, %s160
      %p162 = scmp.eq.s32.totalorder %s161, 0
      %s164 = sadd.s32 %s163, 1
      %s165 = scalar_select %p162, %s163, %s164
      %p168 = pneg %p162
      %p169 = scmp.eq.s32.totalorder %s19, 15
      %p170 = por %p168, %p169
      %p171 = scmp.ne.s32.totalorder %s163, %s166
      %p172 = scmp.eq.s32.totalorder %s19, 0
      %p173 = por %p171, %p172
      %p174 = scmp.ne.s32.totalorder %s163, %s166
      %p175 = scmp.eq.s32.totalorder %s24, 15
      %p176 = por %p174, %p175
      %p177 = scmp.ne.s32.totalorder %s166, %s167
      %p178 = scmp.eq.s32.totalorder %s24, 0
      %p179 = por %p177, %p178
      %p180 = scmp.ne.s32.totalorder %s166, %s167
      %p181 = scmp.eq.s32.totalorder %s25, 15
      %p182 = por %p180, %p181
      %p184 = scmp.ne.s32.totalorder %s167, %s183
      %p185 = scmp.eq.s32.totalorder %s25, 0
      %p186 = por %p184, %p185
      %p187 = scmp.le.s32.totalorder 1, %s19
      %p188 = scmp.lt.s32.totalorder %s19, 17
      %p189 = pnand %p187, %p188
      %p190 = pneg %p189
      // Predicated region
      $region9: #{tpu_custom_call.1} parent=5 // pred_check
        _
      $region10: #{tpu_custom_call.1} parent=5 // pred_check_branch
        %192 = sbr.rel (%p189) target = $region12
      $region11: #{tpu_custom_call.1} parent=5 // pred_region
        %s193 = ssub.s32 %s19, 1
      $region12: #{tpu_custom_call.1} parent=5 // pred_fallthru
        _
      %p194 = scmp.lt.s32.totalorder %s19, 16
      // Predicated region
      $region13: #{tpu_custom_call.1} parent=5 // pred_check
        %p195 = pneg %p194
      $region14: #{tpu_custom_call.1} parent=5 // pred_check_branch
        %197 = sbr.rel (%p195) target = $region16
      $region15: #{tpu_custom_call.1} parent=5 // pred_region
        // Predicated region
        $region17: #{tpu_custom_call.1} parent=15 // pred_check
          %p198 = pneg %p59
        $region18: #{tpu_custom_call.1} parent=15 // pred_check_branch
          %200 = sbr.rel (%p198) target = $region20
        $region19: #{tpu_custom_call.1} parent=15 // pred_region
          %s201 = sand.u32 %s49, 1
          %s202 = scalar_lea.sflag [#allocation5], %s201
          %s203 = sand.u32 %s49, 1
          %s204 = smul.addr %s203, 8
          %s205 = scalar_lea.vmem [#allocation4], %s204
          %s206 = smul.u32 %s27, 2
          %s207 = ssub.s32 7, %s206
          %s208 = smul.u32 %s26, %s207
          %s209 = sadd.s32 %s27, %s208
          %s211 = ssub.s32 128, 128
          %212 = vsyncadd %s202, %s211
          %s213 = smul.addr %s209, 128
          %s214 = scalar_lea.hbm %s0, %s213
          %s216 = sshll.u32 %s205, 4
          %s217 = int_to_ptr.vmem [resolvable:$true] %s216
          %219 = dma.hbm_to_vmem [thread:$0]  %s214, 128, %s217, %s202
        $region20: #{tpu_custom_call.1} parent=15 // pred_fallthru
          _
        // Predicated region
        $region21: #{tpu_custom_call.1} parent=15 // pred_check
          %p220 = pneg %p85
        $region22: #{tpu_custom_call.1} parent=15 // pred_check_branch
          %222 = sbr.rel (%p220) target = $region24
        $region23: #{tpu_custom_call.1} parent=15 // pred_region
          %s223 = sand.u32 %s19, 1
          %s224 = scalar_lea.sflag [#allocation8], %s223
          %s225 = sand.u32 %s75, 1
          %s226 = smul.addr %s225, 64
          %s227 = scalar_lea.vmem [#allocation7], %s226
          %s229 = ssub.s32 1024, 1024
          %230 = vsyncadd %s224, %s229
          %s231 = smul.addr %s26, 8
          %s232 = smul.addr %s231, 128
          %s233 = scalar_lea.hbm %s1, %s232
          %s234 = sshll.u32 %s227, 4
          %s235 = int_to_ptr.vmem [resolvable:$true] %s234
          %240 = dma.hbm_to_vmem [thread:$0]  %s233, 1024, %s235, %s224, 128, 128, 8
        $region24: #{tpu_custom_call.1} parent=15 // pred_fallthru
          _
        // Predicated region
        $region25: #{tpu_custom_call.1} parent=15 // pred_check
          %p241 = pneg %p111
        $region26: #{tpu_custom_call.1} parent=15 // pred_check_branch
          %243 = sbr.rel (%p241) target = $region28
        $region27: #{tpu_custom_call.1} parent=15 // pred_region
          %s244 = sand.u32 %s19, 1
          %s245 = scalar_lea.sflag [#allocation8], %s244
          %s246 = sand.u32 %s101, 1
          %s247 = smul.addr %s246, 32
          %s248 = scalar_lea.vmem [#allocation9], %s247
          %s250 = ssub.s32 512, 512
          %251 = vsyncadd %s245, %s250
          %s252 = smul.addr %s26, 4
          %s253 = smul.addr %s252, 128
          %s254 = scalar_lea.hbm %s2, %s253
          %s255 = sshll.u32 %s248, 4
          %s256 = int_to_ptr.vmem [resolvable:$true] %s255
          %261 = dma.hbm_to_vmem [thread:$0]  %s254, 512, %s256, %s245, 128, 128, 8
        $region28: #{tpu_custom_call.1} parent=15 // pred_fallthru
          _
        // Predicated region
        $region29: #{tpu_custom_call.1} parent=15 // pred_check
          %p262 = pneg %p137
        $region30: #{tpu_custom_call.1} parent=15 // pred_check_branch
          %264 = sbr.rel (%p262) target = $region32
        $region31: #{tpu_custom_call.1} parent=15 // pred_region
          %p265 = scmp.lt.s32.totalorder %s26, 1
          %s266 = scalar_select %p265, %s26, 1
          %s267 = scalar_lea.vmem %s3, %s266
        $region32: #{tpu_custom_call.1} parent=15 // pred_fallthru
          _
      $region16: #{tpu_custom_call.1} parent=5 // pred_fallthru
        _
      %p268 = scmp.le.s32.totalorder 1, %s19
      %p269 = scmp.lt.s32.totalorder %s19, 17
      %p270 = pnand %p268, %p269
      %p271 = pneg %p270
      // Predicated region
      $region33: #{tpu_custom_call.1} parent=5 // pred_check
        _
      $region34: #{tpu_custom_call.1} parent=5 // pred_check_branch
        %273 = sbr.rel (%p270) target = $region36
      $region35: #{tpu_custom_call.1} parent=5 // pred_region
        %s274 = ssub.s32 %s19, 1
        %s275 = sand.u32 %s52, 1
        %s276 = scalar_lea.sflag [#allocation5], %s275
        %s277 = sand.u32 %s52, 1
        %s278 = smul.addr %s277, 8
        %s279 = scalar_lea.vmem [#allocation4], %s278
        // Predicated region
        $region37: #{tpu_custom_call.1} parent=35 // pred_check
          %p280 = pneg %p65
        $region38: #{tpu_custom_call.1} parent=35 // pred_check_branch
          %282 = sbr.rel (%p280) target = $region40
        $region39: #{tpu_custom_call.1} parent=35 // pred_region
          %283 = dma.done %s276, 128
        $region40: #{tpu_custom_call.1} parent=35 // pred_fallthru
          _
        %s284 = sand.u32 %s24, 1
        %s285 = scalar_lea.sflag [#allocation8], %s284
        %s286 = sand.u32 %s78, 1
        %s287 = smul.addr %s286, 64
        %s288 = scalar_lea.vmem [#allocation7], %s287
        // Predicated region
        $region41: #{tpu_custom_call.1} parent=35 // pred_check
          %p289 = pneg %p91
        $region42: #{tpu_custom_call.1} parent=35 // pred_check_branch
          %291 = sbr.rel (%p289) target = $region44
        $region43: #{tpu_custom_call.1} parent=35 // pred_region
          %292 = dma.done %s285, 1024
        $region44: #{tpu_custom_call.1} parent=35 // pred_fallthru
          _
        %s293 = sand.u32 %s24, 1
        %s294 = scalar_lea.sflag [#allocation8], %s293
        %s295 = sand.u32 %s104, 1
        %s296 = smul.addr %s295, 32
        %s297 = scalar_lea.vmem [#allocation9], %s296
        // Predicated region
        $region45: #{tpu_custom_call.1} parent=35 // pred_check
          %p298 = pneg %p117
        $region46: #{tpu_custom_call.1} parent=35 // pred_check_branch
          %300 = sbr.rel (%p298) target = $region48
        $region47: #{tpu_custom_call.1} parent=35 // pred_region
          %301 = dma.done %s294, 512
        $region48: #{tpu_custom_call.1} parent=35 // pred_fallthru
          _
        %s302 = sand.u32 %s52, 1
        %s303 = scalar_lea.sflag [#allocation5], %s302
        %s304 = sand.u32 %s52, 1
        %s305 = smul.addr %s304, 8
        %s306 = scalar_lea.vmem [#allocation4], %s305
        %p307 = pneg %p65
        %p308 = pneg %p62
        %s309 = sand.u32 %s24, 1
        %s310 = scalar_lea.sflag [#allocation8], %s309
        %s311 = sand.u32 %s78, 1
        %s312 = smul.addr %s311, 64
        %s313 = scalar_lea.vmem [#allocation7], %s312
        %p314 = pneg %p91
        %p315 = pneg %p88
        %s316 = sand.u32 %s24, 1
        %s317 = scalar_lea.sflag [#allocation8], %s316
        %s318 = sand.u32 %s104, 1
        %s319 = smul.addr %s318, 32
        %s320 = scalar_lea.vmem [#allocation9], %s319
        %p321 = pneg %p117
        %p322 = pneg %p114
        %p323 = scmp.lt.s32.totalorder %s28, 1
        %s324 = scalar_select %p323, %s28, 1
        %s325 = scalar_lea.vmem %s3, %s324
        %p326 = pneg %p143
        %p327 = pneg %p140
        %p328 = pneg %p179
        %p329 = pneg %p176
        %s330 = sand.u32 %s166, 1
        %s331 = scalar_lea.sflag [#allocation6], %s330
        %s332 = sand.u32 %s166, 1
        %s333 = smul.addr %s332, 8
        %s334 = scalar_lea.vmem [#allocation10], %s333
        %s335 = smul.u32 %s29, 2
        %s336 = ssub.s32 7, %s335
        %s337 = smul.u32 %s28, %s336
        %s338 = sadd.s32 %s29, %s337
        %p339 = scmp.lt.s32.totalorder %s28, 1
        %s340 = scalar_select %p339, %s28, 1
        %s341 = scalar_lea.vmem %s3, %s340
        %s342 = smul.u32 %s29, 2
        %s343 = ssub.s32 7, %s342
        %s344 = smul.u32 %s28, %s343
        %s345 = sadd.s32 %s29, %s344
        %p346 = scmp.eq.s32.totalorder %s29, 0
        // Predicated region
        $region49: #{tpu_custom_call.1} parent=35 // pred_check
          %p347 = pneg %p346
        $region50: #{tpu_custom_call.1} parent=35 // pred_check_branch
          %349 = sbr.rel (%p347) target = $region52
        $region51: #{tpu_custom_call.1} parent=35 // pred_region
          %vm350 = vcmask 261120
          %351 = vst.msk [vmem:[#allocation2] sm:$0xff] %vm350, 0.0
          %352 = vst.msk [vmem:[#allocation3] sm:$0xff] %vm350, 0.0
        $region52: #{tpu_custom_call.1} parent=35 // pred_fallthru
          _
        %v353 = vld [vmem:[%s279] sm:$0xff]
        %v354 = vld [vmem:[%s288] sm:$0xff]
        %v355 = vld [vmem:[%s288 + $0x8] sm:$0xff]
        %v356 = vld [vmem:[%s288 + $0x10] sm:$0xff]
        %v357 = vld [vmem:[%s288 + $0x18] sm:$0xff]
        %v358 = vld [vmem:[%s288 + $0x20] sm:$0xff]
        %v359 = vld [vmem:[%s288 + $0x28] sm:$0xff]
        %v360 = vld [vmem:[%s288 + $0x30] sm:$0xff]
        %v361 = vld [vmem:[%s288 + $0x38] sm:$0xff]
        %v362 = vld [vmem:[%s297] sm:$0xff]
        %v363 = vld [vmem:[%s297 + $0x8] sm:$0xff]
        %v364 = vld [vmem:[%s297 + $0x10] sm:$0xff]
        %v365 = vld [vmem:[%s297 + $0x18] sm:$0xff]
        %v366 = vld [vmem:[%s341] sm:$0x1]
        %v367 = vld [vmem:[#allocation2] sm:$0xff]
        %vm368 = vcmask 261120
        %v370 = vsel %vm368, %v367, 0
        %372 = vmatprep.subr.mxu0 0.0
        %373 = vmatpush1.msra.mxu0 %v362
        %374 = vmatprep.subr.mxu0 0.0
        %375 = vmatpush1.msra.mxu0 %v363
        %376 = vmatprep.subr.mxu0 0.0
        %377 = vmatpush1.msra.mxu0 %v364
        %378 = vmatprep.subr.mxu0 0.0
        %379 = vmatpush1.msra.mxu0 %v365
        %380 = vmatprep.subr.mxu0 0.0
        %381 = vmatpush1.msra.mxu0 0.0
        %382 = vmatprep.subr.mxu0 0.0
        %383 = vmatpush1.msra.mxu0 0.0
        %384 = vmatprep.subr.mxu0 0.0
        %385 = vmatpush1.msra.mxu0 0.0
        %386 = vmatprep.subr.mxu0 0.0
        %387 = vmatpush1.msra.mxu0 0.0
        %388 = vmatprep.subr.mxu0 0.0
        %389 = vmatpush1.msra.mxu0 0.0
        %390 = vmatprep.subr.mxu0 0.0
        %391 = vmatpush1.msra.mxu0 0.0
        %392 = vmatprep.subr.mxu0 0.0
        %393 = vmatpush1.msra.mxu0 0.0
        %394 = vmatprep.subr.mxu0 0.0
        %395 = vmatpush1.msra.mxu0 0.0
        %396 = vmatprep.subr.mxu0 0.0
        %397 = vmatpush1.msra.mxu0 0.0
        %398 = vmatprep.subr.mxu0 0.0
        %399 = vmatpush1.msra.mxu0 0.0
        %400 = vmatprep.subr.mxu0 0.0
        %401 = vmatpush1.msra.mxu0 0.0
        %402 = vmatprep.subr.mxu0 0.0
        %403 = vmatpush1.msra.mxu0 0.0
        %404 = vmatprep.subr.mxu0 0.0
        %405 = vmatpush1.msra.mxu0 0.0
        %406 = vmatprep.subr.mxu0 0.0
        %407 = vmatpush1.msra.mxu0 0.0
        %408 = vmatprep.subr.mxu0 0.0
        %409 = vmatpush1.msra.mxu0 0.0
        %410 = vmatprep.subr.mxu0 0.0
        %411 = vmatpush1.msra.mxu0 0.0
        %412 = vmatprep.subr.mxu0 0.0
        %413 = vmatpush1.msra.mxu0 0.0
        %414 = vmatprep.subr.mxu0 0.0
        %415 = vmatpush1.msra.mxu0 0.0
        %416 = vmatprep.subr.mxu0 0.0
        %417 = vmatpush1.msra.mxu0 0.0
        %418 = vmatprep.subr.mxu0 0.0
        %419 = vmatpush1.msra.mxu0 0.0
        %420 = vmatprep.subr.mxu0 0.0
        %421 = vmatpush1.msra.mxu0 0.0
        %422 = vmatprep.subr.mxu0 0.0
        %423 = vmatpush1.msra.mxu0 0.0
        %424 = vmatprep.subr.mxu0 0.0
        %425 = vmatpush1.msra.mxu0 0.0
        %426 = vmatprep.subr.mxu0 0.0
        %427 = vmatpush1.msra.mxu0 0.0
        %428 = vmatprep.subr.mxu0 0.0
        %429 = vmatpush1.msra.mxu0 0.0
        %430 = vmatprep.subr.mxu0 0.0
        %431 = vmatpush1.msra.mxu0 0.0
        %432 = vmatprep.subr.mxu0 0.0
        %433 = vmatpush1.msra.mxu0 0.0
        %434 = vmatprep.subr.mxu0 0.0
        %435 = vmatpush1.msra.mxu0 0.0
        %436 = vmatprep.mubr.f32.mxu0 0.0
        %437 = vmatmul.mubr.f32.gmra.mrb[0].mxu0 %v370
        %v438 = vpop.f32.mrb[0].mxu0
        %v439 = vadd.f32 0.0, %v438
        %v440 = vpop.f32.mrb[0].mxu0
        %441 = vdwg.mxu0
        %vm442 = vcmask 523264
        %v444 = vsel %vm442, %v353, 0
        %446 = vmatprep.subr.mxu0 0.0
        %447 = vmatpush1.msra.mxu0 %v354
        %448 = vmatprep.subr.mxu0 0.0
        %449 = vmatpush1.msra.mxu0 %v355
        %450 = vmatprep.subr.mxu0 0.0
        %451 = vmatpush1.msra.mxu0 %v356
        %452 = vmatprep.subr.mxu0 0.0
        %453 = vmatpush1.msra.mxu0 %v357
        %454 = vmatprep.subr.mxu0 0.0
        %455 = vmatpush1.msra.mxu0 %v358
        %456 = vmatprep.subr.mxu0 0.0
        %457 = vmatpush1.msra.mxu0 %v359
        %458 = vmatprep.subr.mxu0 0.0
        %459 = vmatpush1.msra.mxu0 %v360
        %460 = vmatprep.subr.mxu0 0.0
        %461 = vmatpush1.msra.mxu0 %v361
        %462 = vmatprep.subr.mxu0 0.0
        %463 = vmatpush1.msra.mxu0 0.0
        %464 = vmatprep.subr.mxu0 0.0
        %465 = vmatpush1.msra.mxu0 0.0
        %466 = vmatprep.subr.mxu0 0.0
        %467 = vmatpush1.msra.mxu0 0.0
        %468 = vmatprep.subr.mxu0 0.0
        %469 = vmatpush1.msra.mxu0 0.0
        %470 = vmatprep.subr.mxu0 0.0
        %471 = vmatpush1.msra.mxu0 0.0
        %472 = vmatprep.subr.mxu0 0.0
        %473 = vmatpush1.msra.mxu0 0.0
        %474 = vmatprep.subr.mxu0 0.0
        %475 = vmatpush1.msra.mxu0 0.0
        %476 = vmatprep.subr.mxu0 0.0
        %477 = vmatpush1.msra.mxu0 0.0
        %478 = vmatprep.subr.mxu0 0.0
        %479 = vmatpush1.msra.mxu0 0.0
        %480 = vmatprep.subr.mxu0 0.0
        %481 = vmatpush1.msra.mxu0 0.0
        %482 = vmatprep.subr.mxu0 0.0
        %483 = vmatpush1.msra.mxu0 0.0
        %484 = vmatprep.subr.mxu0 0.0
        %485 = vmatpush1.msra.mxu0 0.0
        %486 = vmatprep.subr.mxu0 0.0
        %487 = vmatpush1.msra.mxu0 0.0
        %488 = vmatprep.subr.mxu0 0.0
        %489 = vmatpush1.msra.mxu0 0.0
        %490 = vmatprep.subr.mxu0 0.0
        %491 = vmatpush1.msra.mxu0 0.0
        %492 = vmatprep.subr.mxu0 0.0
        %493 = vmatpush1.msra.mxu0 0.0
        %494 = vmatprep.subr.mxu0 0.0
        %495 = vmatpush1.msra.mxu0 0.0
        %496 = vmatprep.subr.mxu0 0.0
        %497 = vmatpush1.msra.mxu0 0.0
        %498 = vmatprep.subr.mxu0 0.0
        %499 = vmatpush1.msra.mxu0 0.0
        %500 = vmatprep.subr.mxu0 0.0
        %501 = vmatpush1.msra.mxu0 0.0
        %502 = vmatprep.subr.mxu0 0.0
        %503 = vmatpush1.msra.mxu0 0.0
        %504 = vmatprep.subr.mxu0 0.0
        %505 = vmatpush1.msra.mxu0 0.0
        %506 = vmatprep.subr.mxu0 0.0
        %507 = vmatpush1.msra.mxu0 0.0
        %508 = vmatprep.subr.mxu0 0.0
        %509 = vmatpush1.msra.mxu0 0.0
        %510 = vmatprep.mubr.f32.mxu0 0.0
        %511 = vmatmul.mubr.f32.gmra.mrb[0].mxu0 %v444
        %v512 = vpop.f32.mrb[0].mxu0
        %v513 = vadd.f32 %v439, %v512
        %v514 = vpop.f32.mrb[0].mxu0
        %515 = vdwg.mxu0
        %v517 = vlaneseq
        %v518 = vshrl.u32 %v517, 7
        %v519 = vsub.s32 0, %v518
        %v520 = vrot.slane %v366, %v519
        %v522 = vadd.f32 %v513, %v520
        %v523 = vxor.u32 %v522, 2147483648
        %v524 = vmul.f32 %v523, 1.442695
        %v525 = vpow.pop %v524
        %v526 = vadd.f32 %v525, 1.0
        %v527 = vrcp.pop %v526
        %v528 = vmul.f32 1.0, %v527
        %v529 = vtanh.pop %v522
        %v530 = vld [vmem:[#allocation3] sm:$0xff]
        %532 = vrot.lane.b32.xlu0 %v530, 32
        %v533 = vpop.permute.xlu0 %532
        %v535 = vmul.f32 %v528, %v533
        %537 = vrot.lane.b32.xlu0 %v529, 64
        %v538 = vpop.permute.xlu0 %537
        %v540 = vmul.f32 %v528, %v538
        %542 = vrot.lane.b32.xlu0 %v540, 32
        %v543 = vpop.permute.xlu0 %542
        %v545 = vadd.f32 %v535, %v543
        %v546 = vtanh.pop %v545
        %548 = vrot.lane.b32.xlu0 %v546, 64
        %v549 = vpop.permute.xlu0 %548
        %v551 = vmul.f32 %v528, %v549
        %553 = vrot.lane.b32.xlu0 %v545, 96
        %v554 = vpop.permute.xlu0 %553
        %556 = vst.msk [vmem:[#allocation3] sm:$0xff] %vm368, %v554
        %558 = vrot.lane.b32.xlu0 %v551, 32
        %v559 = vpop.permute.xlu0 %558
        %561 = vst.msk [vmem:[#allocation2] sm:$0xff] %vm368, %v559
        %562 = vst.msk [vmem:[%s334] sm:$0xff] %vm368, %v559
        %s563 = sand.u32 %s166, 1
        %s564 = scalar_lea.sflag [#allocation6], %s563
        %s565 = sand.u32 %s166, 1
        %s566 = smul.addr %s565, 8
        %s567 = scalar_lea.vmem [#allocation10], %s566
        // Predicated region
        $region53: #{tpu_custom_call.1} parent=35 // pred_check
          %p568 = pneg %p176
        $region54: #{tpu_custom_call.1} parent=35 // pred_check_branch
          %570 = sbr.rel (%p568) target = $region56
        $region55: #{tpu_custom_call.1} parent=35 // pred_region
          %s571 = smul.u32 %s29, 2
          %s572 = ssub.s32 7, %s571
          %s573 = smul.u32 %s28, %s572
          %s574 = sadd.s32 %s29, %s573
          %s576 = ssub.s32 128, 128
          %577 = vsyncadd %s564, %s576
          %s578 = smul.addr %s28, 8
          %s579 = sadd.s32 %s574, %s578
          %s580 = smul.addr %s579, 128
          %s581 = scalar_lea.hbm %s4, %s580
          %s583 = sshll.u32 %s567, 4
          %s584 = int_to_ptr.vmem [resolvable:$true] %s583
          %586 = dma.vmem_to_hbm [thread:$0]  %s584, 128, %s581, %s564
        $region56: #{tpu_custom_call.1} parent=35 // pred_fallthru
          _
      $region36: #{tpu_custom_call.1} parent=5 // pred_fallthru
        _
      %p587 = scmp.le.s32.totalorder 2, %s19
      // Predicated region
      $region57: #{tpu_custom_call.1} parent=5 // pred_check
        %p588 = pneg %p587
      $region58: #{tpu_custom_call.1} parent=5 // pred_check_branch
        %590 = sbr.rel (%p588) target = $region60
      $region59: #{tpu_custom_call.1} parent=5 // pred_region
        %s591 = ssub.s32 %s19, 2
        // Predicated region
        $region61: #{tpu_custom_call.1} parent=59 // pred_check
          %p592 = pneg %p182
        $region62: #{tpu_custom_call.1} parent=59 // pred_check_branch
          %594 = sbr.rel (%p592) target = $region64
        $region63: #{tpu_custom_call.1} parent=59 // pred_region
          %s595 = sand.u32 %s167, 1
          %s596 = scalar_lea.sflag [#allocation6], %s595
          %s597 = sand.u32 %s167, 1
          %s598 = smul.addr %s597, 8
          %s599 = scalar_lea.vmem [#allocation10], %s598
          %600 = dma.done %s596, 128
        $region64: #{tpu_custom_call.1} parent=59 // pred_fallthru
          _
      $region60: #{tpu_custom_call.1} parent=5 // pred_fallthru
        _
    $region6: #{tpu_custom_call.1} parent=1 // loop_footer
      %s23 = sadd.s32 1, %s19
    $region7: #{tpu_custom_call.1} parent=1 // loop_footer_branch
      %18 = sbr.rel target = $region3
    $region8: #{tpu_custom_call.1} parent=1 // loop_exit
      _
    %601 = vsyncpa [#allocation5], 1
    %s602 = scalar_lea.sflag [#allocation5], 1
    %603 = vsyncpa %s602, 1
    %604 = vsyncpa [#allocation8], 1
    %s605 = scalar_lea.sflag [#allocation8], 1
    %606 = vsyncpa %s605, 1
    %607 = vsyncpa [#allocation6], 1
    %s608 = scalar_lea.sflag [#allocation6], 1
    %609 = vsyncpa %s608, 1

</llo_original>
